<compile_context>
chip_gen: v7x
topology: tpu7x:2x2x1
jax: 0.10.0
libtpu: 0.0.40
codegen_flags: <defaults>
</compile_context>

<pallas_src>
import jax
import jax.numpy as jnp
from jax import lax
from jax.experimental import pallas as pl
from jax.experimental.pallas import tpu as pltpu


def _lr_kernel(u_idx_ref, q_idx_ref, u_tabT_ref, q_tabT_ref, out_ref):
    """Score one tile of TB (user, query) index pairs.

    u_idx_ref / q_idx_ref : (1, TB) int32     index tile (VMEM)
    u_tabT_ref            : (D, NU)           user table, transposed, VMEM-resident
    q_tabT_ref            : (D, NQ)           query table, transposed, VMEM-resident
    out_ref               : (1, TB) f32       sigmoid(inner product), lane-dense
    """
    nu = u_tabT_ref.shape[1]
    nq = q_tabT_ref.shape[1]
    tb = out_ref.shape[1]

    u_ids = u_idx_ref[...]                                       # (1, TB) int32
    q_ids = q_idx_ref[...]                                       # (1, TB) int32

    # Vectorized one-hot selection with the batch on the lane axis:
    # onehot[row, pair] = (row == id[pair]).
    u_oh = (lax.broadcasted_iota(jnp.int32, (nu, tb), 0) == u_ids
            ).astype(u_tabT_ref.dtype)                           # (NU, TB)
    q_oh = (lax.broadcasted_iota(jnp.int32, (nq, tb), 0) == q_ids
            ).astype(q_tabT_ref.dtype)                           # (NQ, TB)

    # MXU gather: (D, N) @ (N, TB) -> (D, TB) gathered features.  HIGHEST
    # precision keeps f32 table values bit-faithful through the one-hot matmul
    # (exactly one non-zero per column).
    u_g = jnp.dot(u_tabT_ref[...], u_oh,
                  preferred_element_type=jnp.float32,
                  precision=lax.Precision.HIGHEST)               # (D, TB)
    q_g = jnp.dot(q_tabT_ref[...], q_oh,
                  preferred_element_type=jnp.float32,
                  precision=lax.Precision.HIGHEST)               # (D, TB)

    # Fused multiply -> reduce over D (sublanes) -> sigmoid -> lane-dense store.
    inner = jnp.sum(u_g * q_g, axis=0, keepdims=True)            # (1, TB)
    out_ref[...] = jax.nn.sigmoid(inner)


def lr_net_forward(x_data, user_emb, query_emb, *, tile_b=512):
    """sigmoid(sum(U[x[:,0]] * Q[x[:,1]], axis=1)) -- matches LR_net.forward."""
    B = x_data.shape[0]
    NU, D = user_emb.shape
    NQ, Dq = query_emb.shape
    assert D == Dq, "user/query feature dims must match"

    u_idx = x_data[:, 0].astype(jnp.int32)
    q_idx = x_data[:, 1].astype(jnp.int32)

    # Pairs scored per grid step: multiple of 128 (lane-dense), capped by batch.
    tb = int(tile_b)
    assert tb % 128 == 0 and tb >= 128, "tile_b must be a positive multiple of 128"
    tb = min(tb, pl.cdiv(B, 128) * 128)
    num_tiles = pl.cdiv(B, tb)
    b_pad = num_tiles * tb
    if b_pad != B:
        pad = b_pad - B
        # Pad with a valid row id (0): no OOB gather; padded lanes sliced off below.
        u_idx = jnp.pad(u_idx, (0, pad))
        q_idx = jnp.pad(q_idx, (0, pad))
    u_idx = u_idx.reshape(1, b_pad)
    q_idx = q_idx.reshape(1, b_pad)

    # Tables stay VMEM-resident (constant index_map -> one bulk DMA each) and
    # are passed transposed so the in-kernel gather is a plain (D,N)@(N,TB)
    # matmul with the batch on lanes.  The transpose is a one-off wrapper op.
    u_tabT = user_emb.T       # (D, NU)
    q_tabT = query_emb.T      # (D, NQ)

    # Scoped-VMEM budget: resident tables (x2 for default double-buffering) +
    # pipelined index/output tiles + gather working set, clamped to 48 MiB so
    # it fits v7x's 64 MiB/TC as well as v5e/v6e's 128 MiB.
    # TODO(synk): for embedding tables too large to stay VMEM-resident, switch
    # to memory_space=pl.ANY + a manual double-buffered row-gather DMA (and
    # single-buffer the table BlockSpecs); the demo tables are tiny.
    table_bytes = (user_emb.size * user_emb.dtype.itemsize
                   + query_emb.size * query_emb.dtype.itemsize)
    work_bytes = 4 * tb * (NU + NQ + 4 * D + 16)
    vmem_limit = int(min(48 * 2**20,
                         max(16 * 2**20, 2 * table_bytes + work_bytes + (4 << 20))))

    grid_spec = pltpu.PrefetchScalarGridSpec(
        num_scalar_prefetch=0,
        grid=(num_tiles,),
        in_specs=[
            pl.BlockSpec((1, tb), lambda t: (0, t)),       # user index tile
            pl.BlockSpec((1, tb), lambda t: (0, t)),       # query index tile
            pl.BlockSpec((D, NU), lambda t: (0, 0)),       # resident user table^T
            pl.BlockSpec((D, NQ), lambda t: (0, 0)),       # resident query table^T
        ],
        out_specs=pl.BlockSpec((1, tb), lambda t: (0, t)),
    )

    out = pl.pallas_call(
        _lr_kernel,
        out_shape=jax.ShapeDtypeStruct((1, b_pad), jnp.float32),
        grid_spec=grid_spec,
        compiler_params=pltpu.CompilerParams(
            # Megacore sharding only pays with >=2 batch tiles; otherwise keep a
            # single core so the resident tables are fetched from HBM only once.
            dimension_semantics=(("parallel",) if num_tiles > 1 else ("arbitrary",)),
            vmem_limit_bytes=vmem_limit),
    )(u_idx, q_idx, u_tabT, q_tabT)
    return out[0, :B]


if __name__ == "__main__":
    key = jax.random.PRNGKey(0)
    k_u, k_q, k_x = jax.random.split(key, 3)

    num_users, num_queries, D, B = 16, 12, 32, 8

    # Deterministic "combined features model" parameters (embedding tables).
    user_emb = (0.1 * jax.random.normal(k_u, (num_users, D))).astype(jnp.float32)
    query_emb = (0.1 * jax.random.normal(k_q, (num_queries, D))).astype(jnp.float32)

    u_ids = jax.random.randint(k_x, (B,), 0, num_users, dtype=jnp.int32)
    q_ids = jax.random.randint(jax.random.fold_in(k_x, 1), (B,), 0,
                               num_queries, dtype=jnp.int32)
    x_data = jnp.stack([u_ids, q_ids], axis=1)      # (B, 2) int32 index pairs

    result = jax.block_until_ready(lr_net_forward(x_data, user_emb, query_emb))

    # pure-JAX reference for correctness
    ref = jax.nn.sigmoid(jnp.sum(user_emb[u_ids] * query_emb[q_ids], axis=1))
    assert result.shape == (B,)
    assert jnp.allclose(result, ref, atol=1e-5, rtol=1e-5)
    print("KERNEL_OK")
</pallas_src>

<mosaic_0001>
module attributes {stable_mosaic.version = 11 : i64} {
  func.func @_lr_kernel(%arg0: i32, %arg1: memref<1x128xi32, #tpu.memory_space<vmem>>, %arg2: memref<1x128xi32, #tpu.memory_space<vmem>>, %arg3: memref<32x16xf32, #tpu.memory_space<vmem>>, %arg4: memref<32x12xf32, #tpu.memory_space<vmem>>, %arg5: memref<1x128xf32, #tpu.memory_space<vmem>>) attributes {dimension_semantics = [#tpu.dimension_semantics<arbitrary>], iteration_bounds = array<i64: 1>, scalar_prefetch = 0 : i64, scratch_operands = 0 : i64, tpu.core_type = #tpu.core_type<tc>, window_params = [{transform_indices = @transform_0, window_bounds = array<i64: 1, 128>}, {transform_indices = @transform_1, window_bounds = array<i64: 1, 128>}, {pipeline_mode = #tpu.pipeline_mode<synchronous>, transform_indices = @transform_2, window_bounds = array<i64: 32, 16>}, {pipeline_mode = #tpu.pipeline_mode<synchronous>, transform_indices = @transform_3, window_bounds = array<i64: 32, 12>}, {transform_indices = @transform_4, window_bounds = array<i64: 1, 128>}]} {
    %c0 = arith.constant 0 : index
    %c0_0 = arith.constant 0 : index
    %0 = vector.load %arg1[%c0, %c0_0] : memref<1x128xi32, #tpu.memory_space<vmem>>, vector<1x128xi32>
    %c0_1 = arith.constant 0 : index
    %c0_2 = arith.constant 0 : index
    %1 = vector.load %arg2[%c0_1, %c0_2] : memref<1x128xi32, #tpu.memory_space<vmem>>, vector<1x128xi32>
    %2 = tpu.iota {dimensions = array<i32: 0>} : vector<16x128xi32>
    %3 = vector.broadcast %0 : vector<1x128xi32> to vector<16x128xi32>
    %4 = arith.cmpi eq, %2, %3 : vector<16x128xi32>
    %5 = arith.extui %4 : vector<16x128xi1> to vector<16x128xi32>
    %6 = arith.sitofp %5 : vector<16x128xi32> to vector<16x128xf32>
    %7 = tpu.iota {dimensions = array<i32: 0>} : vector<12x128xi32>
    %8 = vector.broadcast %1 : vector<1x128xi32> to vector<12x128xi32>
    %9 = arith.cmpi eq, %7, %8 : vector<12x128xi32>
    %10 = arith.extui %9 : vector<12x128xi1> to vector<12x128xi32>
    %11 = arith.sitofp %10 : vector<12x128xi32> to vector<12x128xf32>
    %c0_3 = arith.constant 0 : index
    %c0_4 = arith.constant 0 : index
    %12 = vector.load %arg3[%c0_3, %c0_4] : memref<32x16xf32, #tpu.memory_space<vmem>>, vector<32x16xf32>
    %cst = arith.constant dense<0.000000e+00> : vector<32x128xf32>
    %13 = tpu.matmul %12, %6, %cst {dimension_numbers = #tpu.dot_dimension_numbers<[1], [0], [0], [1], [0, 0, 1, 1], [], []>, precision = #tpu.contract_precision<fp32>} : vector<32x16xf32>, vector<16x128xf32>, vector<32x128xf32> -> vector<32x128xf32>
    %c0_5 = arith.constant 0 : index
    %c0_6 = arith.constant 0 : index
    %14 = vector.load %arg4[%c0_5, %c0_6] : memref<32x12xf32, #tpu.memory_space<vmem>>, vector<32x12xf32>
    %cst_7 = arith.constant dense<0.000000e+00> : vector<32x128xf32>
    %15 = tpu.matmul %14, %11, %cst_7 {dimension_numbers = #tpu.dot_dimension_numbers<[1], [0], [0], [1], [0, 0, 1, 1], [], []>, precision = #tpu.contract_precision<fp32>} : vector<32x12xf32>, vector<12x128xf32>, vector<32x128xf32> -> vector<32x128xf32>
    %16 = arith.mulf %13, %15 : vector<32x128xf32>
    %cst_8 = arith.constant dense<0.000000e+00> : vector<128xf32>
    %17 = vector.multi_reduction <add>, %16, %cst_8 [0] : vector<32x128xf32> to vector<128xf32>
    %18 = vector.shape_cast %17 : vector<128xf32> to vector<1x128xf32>
    %19 = arith.negf %18 : vector<1x128xf32>
    %20 = math.exp %19 : vector<1x128xf32>
    %cst_9 = arith.constant 1.000000e+00 : f32
    %21 = vector.broadcast %cst_9 : f32 to vector<1x128xf32>
    %22 = arith.addf %21, %20 : vector<1x128xf32>
    %23 = arith.divf %21, %22 : vector<1x128xf32>
    %c0_10 = arith.constant 0 : index
    %c0_11 = arith.constant 0 : index
    %24 = vector.load %arg5[%c0_10, %c0_11] : memref<1x128xf32, #tpu.memory_space<vmem>>, vector<1x128xf32>
    tpu.vector_store %arg5[%c0_10, %c0_11], %23 {strides = array<i32>} : memref<1x128xf32, #tpu.memory_space<vmem>>, vector<1x128xf32>,
    return
  }
  func.func @transform_0(%arg0: i32) -> (i32, i32) {
    %c0_i32 = arith.constant 0 : i32
    %c0_i32_0 = arith.constant 0 : i32
    return %c0_i32, %arg0 : i32, i32
  }
  func.func @transform_1(%arg0: i32) -> (i32, i32) {
    %c0_i32 = arith.constant 0 : i32
    %c0_i32_0 = arith.constant 0 : i32
    return %c0_i32, %arg0 : i32, i32
  }
  func.func @transform_2(%arg0: i32) -> (i32, i32) {
    %c0_i32 = arith.constant 0 : i32
    %c0_i32_0 = arith.constant 0 : i32
    %c0_i32_1 = arith.constant 0 : i32
    return %c0_i32, %c0_i32_0 : i32, i32
  }
  func.func @transform_3(%arg0: i32) -> (i32, i32) {
    %c0_i32 = arith.constant 0 : i32
    %c0_i32_0 = arith.constant 0 : i32
    %c0_i32_1 = arith.constant 0 : i32
    return %c0_i32, %c0_i32_0 : i32, i32
  }
  func.func @transform_4(%arg0: i32) -> (i32, i32) {
    %c0_i32 = arith.constant 0 : i32
    %c0_i32_0 = arith.constant 0 : i32
    return %c0_i32, %arg0 : i32, i32
  }
}

</mosaic_0001>

<llo_original>
// kernel: tpu_custom_call.1
$region0: #{tpu_custom_call.1}
  #allocation0 [shape = 'u32[]', space=smem, size = 0x4, offset = 0x4, fixed_abs, tag = 'smem constant byte address 0x4 - core index']
  #allocation1 [shape = 'u32[144,128]{1,0:T(1,128)}', space=vmem, size = 0x12000, scoped, tag = 'internal scratch']
  %s0 = inlined_call_operand.vmem [shape: s32[1,128], index: 0, kind: input, shape index: {}]
  %s1 = inlined_call_operand.vmem [shape: s32[1,128], index: 1, kind: input, shape index: {}]
  %s2 = inlined_call_operand.vmem [shape: f32[32,16], index: 2, kind: input, shape index: {}]
  %s3 = inlined_call_operand.vmem [shape: f32[32,12], index: 3, kind: input, shape index: {}]
  %s4 = inlined_call_operand.hbm [shape: f32[1,128], index: 4, kind: output, shape index: {}]
  %s5 = sld [smem:[#allocation0]]
  $region26: #{tpu_custom_call.1} parent=0
    _
  %s7 = ssub.s32 1, %s5
  %s8 = scalar_select 0, %s7, %s5
  $region1: #{tpu_custom_call.1} parent=0
    #allocation2 [shape = 'u8[512]{0}', space=vmem, size = 0x400, scoped, tag = 'output window, operand 0, single buffered']
    #allocation3 [shape = 's32[1]{0}', space=sflag, size = 0x4, scoped, tag = 'scoped memory for tpu_custom_call.1']
    %9 = vsyncpa [#allocation3], 0
    // Predicated region
    $region2: #{tpu_custom_call.1} parent=1 // pred_check
      _
    $region3: #{tpu_custom_call.1} parent=1 // pred_check_branch
      %11 = sbr.rel (0) target = $region5
    $region4: #{tpu_custom_call.1} parent=1 // pred_region
      _
    $region5: #{tpu_custom_call.1} parent=1 // pred_fallthru
      _
    // Predicated region
    $region6: #{tpu_custom_call.1} parent=1 // pred_check
      _
    $region7: #{tpu_custom_call.1} parent=1 // pred_check_branch
      %13 = sbr.rel (0) target = $region9
    $region8: #{tpu_custom_call.1} parent=1 // pred_region
      _
    $region9: #{tpu_custom_call.1} parent=1 // pred_fallthru
      _
    // Predicated region
    $region10: #{tpu_custom_call.1} parent=1 // pred_check
      _
    $region11: #{tpu_custom_call.1} parent=1 // pred_check_branch
      %15 = sbr.rel (0) target = $region13
    $region12: #{tpu_custom_call.1} parent=1 // pred_region
      _
    $region13: #{tpu_custom_call.1} parent=1 // pred_fallthru
      _
    // Predicated region
    $region14: #{tpu_custom_call.1} parent=1 // pred_check
      _
    $region15: #{tpu_custom_call.1} parent=1 // pred_check_branch
      %17 = sbr.rel (0) target = $region17
    $region16: #{tpu_custom_call.1} parent=1 // pred_region
      _
    $region17: #{tpu_custom_call.1} parent=1 // pred_fallthru
      _
    %v18 = vld [vmem:[%s0] sm:$0x1]
    %v19 = vld [vmem:[%s1] sm:$0x1]
    %v20 = vlaneseq
    %v21 = vshrl.u32 %v20, 7
    %v22 = vadd.s32 %v21, 8
    %v23 = vlaneseq
    %v24 = vshrl.u32 %v23, 7
    %v25 = vsub.s32 0, %v24
    %v26 = vrot.slane %v18, %v25
    %vm27 = vcmp.eq.s32.totalorder %v21, %v26
    %vm28 = vcmp.eq.s32.totalorder %v22, %v26
    %v29 = vsel %vm27, 1, 0
    %v30 = vsel %vm28, 1, 0
    %v31 = vcvt.s32.f32 %v29
    %v32 = vcvt.s32.f32 %v30
    %v33 = vlaneseq
    %v34 = vshrl.u32 %v33, 7
    %v35 = vsub.s32 0, %v34
    %v36 = vrot.slane %v19, %v35
    %vm37 = vcmp.eq.s32.totalorder %v21, %v36
    %vm38 = vcmp.eq.s32.totalorder %v22, %v36
    %v39 = vsel %vm37, 1, 0
    %v40 = vsel %vm38, 1, 0
    %v41 = vcvt.s32.f32 %v39
    %v42 = vcvt.s32.f32 %v40
    %v43 = vld [vmem:[%s2] sm:$0xff]
    %v44 = vld [vmem:[%s2 + $0x8] sm:$0xff]
    %v45 = vld [vmem:[%s2 + $0x10] sm:$0xff]
    %v46 = vld [vmem:[%s2 + $0x18] sm:$0xff]
    %vm47 = vcmask 130048
    %v49 = vsel %vm47, %v43, 0
    %v52 = vsel %vm47, %v44, 0
    %v55 = vsel %vm47, %v45, 0
    %v58 = vsel %vm47, %v46, 0
    %60 = vmatprep.subr.mxu0 0.0
    %v61 = vand.u32 %v31, 4294901760
    %62 = vmatpush1.msra.mxu0 %v61
    %63 = vmatprep.subr.mxu0 0.0
    %v64 = vand.u32 %v32, 4294901760
    %65 = vmatpush1.msra.mxu0 %v64
    %66 = vmatprep.subr.mxu0 0.0
    %67 = vmatpush1.msra.mxu0 0.0
    %68 = vmatprep.subr.mxu0 0.0
    %69 = vmatpush1.msra.mxu0 0.0
    %70 = vmatprep.subr.mxu0 0.0
    %71 = vmatpush1.msra.mxu0 0.0
    %72 = vmatprep.subr.mxu0 0.0
    %73 = vmatpush1.msra.mxu0 0.0
    %74 = vmatprep.subr.mxu0 0.0
    %75 = vmatpush1.msra.mxu0 0.0
    %76 = vmatprep.subr.mxu0 0.0
    %77 = vmatpush1.msra.mxu0 0.0
    %78 = vmatprep.subr.mxu0 0.0
    %79 = vmatpush1.msra.mxu0 0.0
    %80 = vmatprep.subr.mxu0 0.0
    %81 = vmatpush1.msra.mxu0 0.0
    %82 = vmatprep.subr.mxu0 0.0
    %83 = vmatpush1.msra.mxu0 0.0
    %84 = vmatprep.subr.mxu0 0.0
    %85 = vmatpush1.msra.mxu0 0.0
    %86 = vmatprep.subr.mxu0 0.0
    %87 = vmatpush1.msra.mxu0 0.0
    %88 = vmatprep.subr.mxu0 0.0
    %89 = vmatpush1.msra.mxu0 0.0
    %90 = vmatprep.subr.mxu0 0.0
    %91 = vmatpush1.msra.mxu0 0.0
    %92 = vmatprep.subr.mxu0 0.0
    %93 = vmatpush1.msra.mxu0 0.0
    %94 = vmatprep.subr.mxu0 0.0
    %95 = vmatpush1.msra.mxu0 0.0
    %96 = vmatprep.subr.mxu0 0.0
    %97 = vmatpush1.msra.mxu0 0.0
    %98 = vmatprep.subr.mxu0 0.0
    %99 = vmatpush1.msra.mxu0 0.0
    %100 = vmatprep.subr.mxu0 0.0
    %101 = vmatpush1.msra.mxu0 0.0
    %102 = vmatprep.subr.mxu0 0.0
    %103 = vmatpush1.msra.mxu0 0.0
    %104 = vmatprep.subr.mxu0 0.0
    %105 = vmatpush1.msra.mxu0 0.0
    %106 = vmatprep.subr.mxu0 0.0
    %107 = vmatpush1.msra.mxu0 0.0
    %108 = vmatprep.subr.mxu0 0.0
    %109 = vmatpush1.msra.mxu0 0.0
    %110 = vmatprep.subr.mxu0 0.0
    %111 = vmatpush1.msra.mxu0 0.0
    %112 = vmatprep.subr.mxu0 0.0
    %113 = vmatpush1.msra.mxu0 0.0
    %114 = vmatprep.subr.mxu0 0.0
    %115 = vmatpush1.msra.mxu0 0.0
    %116 = vmatprep.subr.mxu0 0.0
    %117 = vmatpush1.msra.mxu0 0.0
    %118 = vmatprep.subr.mxu0 0.0
    %119 = vmatpush1.msra.mxu0 0.0
    %120 = vmatprep.subr.mxu0 0.0
    %121 = vmatpush1.msra.mxu0 0.0
    %122 = vmatprep.subr.mxu0 0.0
    %123 = vmatpush1.msra.mxu0 0.0
    %124 = vmatprep.subr.mxu0 0.0
    %125 = vmatpush1.msra.mxu0 0.0
    %126 = vmatprep.mubr.f32.mxu0 0.0
    %v127 = vand.u32 %v49, 4294901760
    %v128 = vsub.f32 %v49, %v127
    %v129 = vand.u32 %v128, 4294901760
    %v130 = vsub.f32 %v128, %v129
    %v131 = vand.u32 %v130, 4294901760
    %132 = vmatmul.mubr.f32.gmra.mrb[0].mxu0 %v131
    %v133 = vpop.f32.mrb[0].mxu0
    %v134 = vadd.f32 0.0, %v133
    %v135 = vpop.f32.mrb[0].mxu0
    %136 = vmatprep.mubr.f32.mxu0 0.0
    %v137 = vand.u32 %v52, 4294901760
    %v138 = vsub.f32 %v52, %v137
    %v139 = vand.u32 %v138, 4294901760
    %v140 = vsub.f32 %v138, %v139
    %v141 = vand.u32 %v140, 4294901760
    %142 = vmatmul.mubr.f32.gmra.mrb[0].mxu0 %v141
    %v143 = vpop.f32.mrb[0].mxu0
    %v144 = vadd.f32 0.0, %v143
    %v145 = vpop.f32.mrb[0].mxu0
    %146 = vmatprep.mubr.f32.mxu0 0.0
    %v147 = vand.u32 %v55, 4294901760
    %v148 = vsub.f32 %v55, %v147
    %v149 = vand.u32 %v148, 4294901760
    %v150 = vsub.f32 %v148, %v149
    %v151 = vand.u32 %v150, 4294901760
    %152 = vmatmul.mubr.f32.gmra.mrb[0].mxu0 %v151
    %v153 = vpop.f32.mrb[0].mxu0
    %v154 = vadd.f32 0.0, %v153
    %v155 = vpop.f32.mrb[0].mxu0
    %156 = vmatprep.mubr.f32.mxu0 0.0
    %v157 = vand.u32 %v58, 4294901760
    %v158 = vsub.f32 %v58, %v157
    %v159 = vand.u32 %v158, 4294901760
    %v160 = vsub.f32 %v158, %v159
    %v161 = vand.u32 %v160, 4294901760
    %162 = vmatmul.mubr.f32.gmra.mrb[0].mxu0 %v161
    %v163 = vpop.f32.mrb[0].mxu0
    %v164 = vadd.f32 0.0, %v163
    %v165 = vpop.f32.mrb[0].mxu0
    %166 = vdwg.mxu0
    %167 = vmatprep.subr.mxu0 0.0
    %v168 = vand.u32 %v31, 4294901760
    %v169 = vsub.f32 %v31, %v168
    %v170 = vand.u32 %v169, 4294901760
    %v171 = vsub.f32 %v169, %v170
    %v172 = vand.u32 %v171, 4294901760
    %173 = vmatpush1.msra.mxu0 %v172
    %174 = vmatprep.subr.mxu0 0.0
    %v175 = vand.u32 %v32, 4294901760
    %v176 = vsub.f32 %v32, %v175
    %v177 = vand.u32 %v176, 4294901760
    %v178 = vsub.f32 %v176, %v177
    %v179 = vand.u32 %v178, 4294901760
    %180 = vmatpush1.msra.mxu0 %v179
    %181 = vmatprep.subr.mxu0 0.0
    %182 = vmatpush1.msra.mxu0 0.0
    %183 = vmatprep.subr.mxu0 0.0
    %184 = vmatpush1.msra.mxu0 0.0
    %185 = vmatprep.subr.mxu0 0.0
    %186 = vmatpush1.msra.mxu0 0.0
    %187 = vmatprep.subr.mxu0 0.0
    %188 = vmatpush1.msra.mxu0 0.0
    %189 = vmatprep.subr.mxu0 0.0
    %190 = vmatpush1.msra.mxu0 0.0
    %191 = vmatprep.subr.mxu0 0.0
    %192 = vmatpush1.msra.mxu0 0.0
    %193 = vmatprep.subr.mxu0 0.0
    %194 = vmatpush1.msra.mxu0 0.0
    %195 = vmatprep.subr.mxu0 0.0
    %196 = vmatpush1.msra.mxu0 0.0
    %197 = vmatprep.subr.mxu0 0.0
    %198 = vmatpush1.msra.mxu0 0.0
    %199 = vmatprep.subr.mxu0 0.0
    %200 = vmatpush1.msra.mxu0 0.0
    %201 = vmatprep.subr.mxu0 0.0
    %202 = vmatpush1.msra.mxu0 0.0
    %203 = vmatprep.subr.mxu0 0.0
    %204 = vmatpush1.msra.mxu0 0.0
    %205 = vmatprep.subr.mxu0 0.0
    %206 = vmatpush1.msra.mxu0 0.0
    %207 = vmatprep.subr.mxu0 0.0
    %208 = vmatpush1.msra.mxu0 0.0
    %209 = vmatprep.subr.mxu0 0.0
    %210 = vmatpush1.msra.mxu0 0.0
    %211 = vmatprep.subr.mxu0 0.0
    %212 = vmatpush1.msra.mxu0 0.0
    %213 = vmatprep.subr.mxu0 0.0
    %214 = vmatpush1.msra.mxu0 0.0
    %215 = vmatprep.subr.mxu0 0.0
    %216 = vmatpush1.msra.mxu0 0.0
    %217 = vmatprep.subr.mxu0 0.0
    %218 = vmatpush1.msra.mxu0 0.0
    %219 = vmatprep.subr.mxu0 0.0
    %220 = vmatpush1.msra.mxu0 0.0
    %221 = vmatprep.subr.mxu0 0.0
    %222 = vmatpush1.msra.mxu0 0.0
    %223 = vmatprep.subr.mxu0 0.0
    %224 = vmatpush1.msra.mxu0 0.0
    %225 = vmatprep.subr.mxu0 0.0
    %226 = vmatpush1.msra.mxu0 0.0
    %227 = vmatprep.subr.mxu0 0.0
    %228 = vmatpush1.msra.mxu0 0.0
    %229 = vmatprep.subr.mxu0 0.0
    %230 = vmatpush1.msra.mxu0 0.0
    %231 = vmatprep.subr.mxu0 0.0
    %232 = vmatpush1.msra.mxu0 0.0
    %233 = vmatprep.subr.mxu0 0.0
    %234 = vmatpush1.msra.mxu0 0.0
    %235 = vmatprep.subr.mxu0 0.0
    %236 = vmatpush1.msra.mxu0 0.0
    %237 = vmatprep.subr.mxu0 0.0
    %238 = vmatpush1.msra.mxu0 0.0
    %239 = vmatprep.subr.mxu0 0.0
    %240 = vmatpush1.msra.mxu0 0.0
    %241 = vmatprep.mubr.f32.mxu0 0.0
    %v242 = vand.u32 %v49, 4294901760
    %243 = vmatmul.mubr.f32.gmra.mrb[0].mxu0 %v242
    %v244 = vpop.f32.mrb[0].mxu0
    %v245 = vadd.f32 %v134, %v244
    %v246 = vpop.f32.mrb[0].mxu0
    %247 = vmatprep.mubr.f32.mxu0 0.0
    %v248 = vand.u32 %v52, 4294901760
    %249 = vmatmul.mubr.f32.gmra.mrb[0].mxu0 %v248
    %v250 = vpop.f32.mrb[0].mxu0
    %v251 = vadd.f32 %v144, %v250
    %v252 = vpop.f32.mrb[0].mxu0
    %253 = vmatprep.mubr.f32.mxu0 0.0
    %v254 = vand.u32 %v55, 4294901760
    %255 = vmatmul.mubr.f32.gmra.mrb[0].mxu0 %v254
    %v256 = vpop.f32.mrb[0].mxu0
    %v257 = vadd.f32 %v154, %v256
    %v258 = vpop.f32.mrb[0].mxu0
    %259 = vmatprep.mubr.f32.mxu0 0.0
    %v260 = vand.u32 %v58, 4294901760
    %261 = vmatmul.mubr.f32.gmra.mrb[0].mxu0 %v260
    %v262 = vpop.f32.mrb[0].mxu0
    %v263 = vadd.f32 %v164, %v262
    %v264 = vpop.f32.mrb[0].mxu0
    %265 = vdwg.mxu0
    %266 = vmatprep.subr.mxu0 0.0
    %v267 = vand.u32 %v31, 4294901760
    %v268 = vsub.f32 %v31, %v267
    %269 = vmatpush1.msra.mxu0 %v268
    %270 = vmatprep.subr.mxu0 0.0
    %v271 = vand.u32 %v32, 4294901760
    %v272 = vsub.f32 %v32, %v271
    %273 = vmatpush1.msra.mxu0 %v272
    %274 = vmatprep.subr.mxu0 0.0
    %275 = vmatpush1.msra.mxu0 0.0
    %276 = vmatprep.subr.mxu0 0.0
    %277 = vmatpush1.msra.mxu0 0.0
    %278 = vmatprep.subr.mxu0 0.0
    %279 = vmatpush1.msra.mxu0 0.0
    %280 = vmatprep.subr.mxu0 0.0
    %281 = vmatpush1.msra.mxu0 0.0
    %282 = vmatprep.subr.mxu0 0.0
    %283 = vmatpush1.msra.mxu0 0.0
    %284 = vmatprep.subr.mxu0 0.0
    %285 = vmatpush1.msra.mxu0 0.0
    %286 = vmatprep.subr.mxu0 0.0
    %287 = vmatpush1.msra.mxu0 0.0
    %288 = vmatprep.subr.mxu0 0.0
    %289 = vmatpush1.msra.mxu0 0.0
    %290 = vmatprep.subr.mxu0 0.0
    %291 = vmatpush1.msra.mxu0 0.0
    %292 = vmatprep.subr.mxu0 0.0
    %293 = vmatpush1.msra.mxu0 0.0
    %294 = vmatprep.subr.mxu0 0.0
    %295 = vmatpush1.msra.mxu0 0.0
    %296 = vmatprep.subr.mxu0 0.0
    %297 = vmatpush1.msra.mxu0 0.0
    %298 = vmatprep.subr.mxu0 0.0
    %299 = vmatpush1.msra.mxu0 0.0
    %300 = vmatprep.subr.mxu0 0.0
    %301 = vmatpush1.msra.mxu0 0.0
    %302 = vmatprep.subr.mxu0 0.0
    %303 = vmatpush1.msra.mxu0 0.0
    %304 = vmatprep.subr.mxu0 0.0
    %305 = vmatpush1.msra.mxu0 0.0
    %306 = vmatprep.subr.mxu0 0.0
    %307 = vmatpush1.msra.mxu0 0.0
    %308 = vmatprep.subr.mxu0 0.0
    %309 = vmatpush1.msra.mxu0 0.0
    %310 = vmatprep.subr.mxu0 0.0
    %311 = vmatpush1.msra.mxu0 0.0
    %312 = vmatprep.subr.mxu0 0.0
    %313 = vmatpush1.msra.mxu0 0.0
    %314 = vmatprep.subr.mxu0 0.0
    %315 = vmatpush1.msra.mxu0 0.0
    %316 = vmatprep.subr.mxu0 0.0
    %317 = vmatpush1.msra.mxu0 0.0
    %318 = vmatprep.subr.mxu0 0.0
    %319 = vmatpush1.msra.mxu0 0.0
    %320 = vmatprep.subr.mxu0 0.0
    %321 = vmatpush1.msra.mxu0 0.0
    %322 = vmatprep.subr.mxu0 0.0
    %323 = vmatpush1.msra.mxu0 0.0
    %324 = vmatprep.subr.mxu0 0.0
    %325 = vmatpush1.msra.mxu0 0.0
    %326 = vmatprep.subr.mxu0 0.0
    %327 = vmatpush1.msra.mxu0 0.0
    %328 = vmatprep.subr.mxu0 0.0
    %329 = vmatpush1.msra.mxu0 0.0
    %330 = vmatprep.subr.mxu0 0.0
    %331 = vmatpush1.msra.mxu0 0.0
    %332 = vmatprep.subr.mxu0 0.0
    %333 = vmatpush1.msra.mxu0 0.0
    %334 = vmatprep.mubr.f32.mxu0 0.0
    %v335 = vand.u32 %v49, 4294901760
    %v336 = vsub.f32 %v49, %v335
    %337 = vmatmul.mubr.f32.gmra.mrb[0].mxu0 %v336
    %v338 = vpop.f32.mrb[0].mxu0
    %v339 = vadd.f32 %v245, %v338
    %v340 = vpop.f32.mrb[0].mxu0
    %341 = vmatprep.mubr.f32.mxu0 0.0
    %v342 = vand.u32 %v52, 4294901760
    %v343 = vsub.f32 %v52, %v342
    %344 = vmatmul.mubr.f32.gmra.mrb[0].mxu0 %v343
    %v345 = vpop.f32.mrb[0].mxu0
    %v346 = vadd.f32 %v251, %v345
    %v347 = vpop.f32.mrb[0].mxu0
    %348 = vmatprep.mubr.f32.mxu0 0.0
    %v349 = vand.u32 %v55, 4294901760
    %v350 = vsub.f32 %v55, %v349
    %351 = vmatmul.mubr.f32.gmra.mrb[0].mxu0 %v350
    %v352 = vpop.f32.mrb[0].mxu0
    %v353 = vadd.f32 %v257, %v352
    %v354 = vpop.f32.mrb[0].mxu0
    %355 = vmatprep.mubr.f32.mxu0 0.0
    %v356 = vand.u32 %v58, 4294901760
    %v357 = vsub.f32 %v58, %v356
    %358 = vmatmul.mubr.f32.gmra.mrb[0].mxu0 %v357
    %v359 = vpop.f32.mrb[0].mxu0
    %v360 = vadd.f32 %v263, %v359
    %v361 = vpop.f32.mrb[0].mxu0
    %362 = vdwg.mxu0
    %363 = vmatprep.subr.mxu0 0.0
    %v364 = vand.u32 %v31, 4294901760
    %365 = vmatpush1.msra.mxu0 %v364
    %366 = vmatprep.subr.mxu0 0.0
    %v367 = vand.u32 %v32, 4294901760
    %368 = vmatpush1.msra.mxu0 %v367
    %369 = vmatprep.subr.mxu0 0.0
    %370 = vmatpush1.msra.mxu0 0.0
    %371 = vmatprep.subr.mxu0 0.0
    %372 = vmatpush1.msra.mxu0 0.0
    %373 = vmatprep.subr.mxu0 0.0
    %374 = vmatpush1.msra.mxu0 0.0
    %375 = vmatprep.subr.mxu0 0.0
    %376 = vmatpush1.msra.mxu0 0.0
    %377 = vmatprep.subr.mxu0 0.0
    %378 = vmatpush1.msra.mxu0 0.0
    %379 = vmatprep.subr.mxu0 0.0
    %380 = vmatpush1.msra.mxu0 0.0
    %381 = vmatprep.subr.mxu0 0.0
    %382 = vmatpush1.msra.mxu0 0.0
    %383 = vmatprep.subr.mxu0 0.0
    %384 = vmatpush1.msra.mxu0 0.0
    %385 = vmatprep.subr.mxu0 0.0
    %386 = vmatpush1.msra.mxu0 0.0
    %387 = vmatprep.subr.mxu0 0.0
    %388 = vmatpush1.msra.mxu0 0.0
    %389 = vmatprep.subr.mxu0 0.0
    %390 = vmatpush1.msra.mxu0 0.0
    %391 = vmatprep.subr.mxu0 0.0
    %392 = vmatpush1.msra.mxu0 0.0
    %393 = vmatprep.subr.mxu0 0.0
    %394 = vmatpush1.msra.mxu0 0.0
    %395 = vmatprep.subr.mxu0 0.0
    %396 = vmatpush1.msra.mxu0 0.0
    %397 = vmatprep.subr.mxu0 0.0
    %398 = vmatpush1.msra.mxu0 0.0
    %399 = vmatprep.subr.mxu0 0.0
    %400 = vmatpush1.msra.mxu0 0.0
    %401 = vmatprep.subr.mxu0 0.0
    %402 = vmatpush1.msra.mxu0 0.0
    %403 = vmatprep.subr.mxu0 0.0
    %404 = vmatpush1.msra.mxu0 0.0
    %405 = vmatprep.subr.mxu0 0.0
    %406 = vmatpush1.msra.mxu0 0.0
    %407 = vmatprep.subr.mxu0 0.0
    %408 = vmatpush1.msra.mxu0 0.0
    %409 = vmatprep.subr.mxu0 0.0
    %410 = vmatpush1.msra.mxu0 0.0
    %411 = vmatprep.subr.mxu0 0.0
    %412 = vmatpush1.msra.mxu0 0.0
    %413 = vmatprep.subr.mxu0 0.0
    %414 = vmatpush1.msra.mxu0 0.0
    %415 = vmatprep.subr.mxu0 0.0
    %416 = vmatpush1.msra.mxu0 0.0
    %417 = vmatprep.subr.mxu0 0.0
    %418 = vmatpush1.msra.mxu0 0.0
    %419 = vmatprep.subr.mxu0 0.0
    %420 = vmatpush1.msra.mxu0 0.0
    %421 = vmatprep.subr.mxu0 0.0
    %422 = vmatpush1.msra.mxu0 0.0
    %423 = vmatprep.subr.mxu0 0.0
    %424 = vmatpush1.msra.mxu0 0.0
    %425 = vmatprep.subr.mxu0 0.0
    %426 = vmatpush1.msra.mxu0 0.0
    %427 = vmatprep.subr.mxu0 0.0
    %428 = vmatpush1.msra.mxu0 0.0
    %429 = vmatprep.mubr.f32.mxu0 0.0
    %v430 = vand.u32 %v49, 4294901760
    %v431 = vsub.f32 %v49, %v430
    %v432 = vand.u32 %v431, 4294901760
    %433 = vmatmul.mubr.f32.gmra.mrb[0].mxu0 %v432
    %v434 = vpop.f32.mrb[0].mxu0
    %v435 = vadd.f32 %v339, %v434
    %v436 = vpop.f32.mrb[0].mxu0
    %437 = vmatprep.mubr.f32.mxu0 0.0
    %v438 = vand.u32 %v52, 4294901760
    %v439 = vsub.f32 %v52, %v438
    %v440 = vand.u32 %v439, 4294901760
    %441 = vmatmul.mubr.f32.gmra.mrb[0].mxu0 %v440
    %v442 = vpop.f32.mrb[0].mxu0
    %v443 = vadd.f32 %v346, %v442
    %v444 = vpop.f32.mrb[0].mxu0
    %445 = vmatprep.mubr.f32.mxu0 0.0
    %v446 = vand.u32 %v55, 4294901760
    %v447 = vsub.f32 %v55, %v446
    %v448 = vand.u32 %v447, 4294901760
    %449 = vmatmul.mubr.f32.gmra.mrb[0].mxu0 %v448
    %v450 = vpop.f32.mrb[0].mxu0
    %v451 = vadd.f32 %v353, %v450
    %v452 = vpop.f32.mrb[0].mxu0
    %453 = vmatprep.mubr.f32.mxu0 0.0
    %v454 = vand.u32 %v58, 4294901760
    %v455 = vsub.f32 %v58, %v454
    %v456 = vand.u32 %v455, 4294901760
    %457 = vmatmul.mubr.f32.gmra.mrb[0].mxu0 %v456
    %v458 = vpop.f32.mrb[0].mxu0
    %v459 = vadd.f32 %v360, %v458
    %v460 = vpop.f32.mrb[0].mxu0
    %461 = vdwg.mxu0
    %462 = vmatprep.subr.mxu0 0.0
    %v463 = vand.u32 %v31, 4294901760
    %v464 = vsub.f32 %v31, %v463
    %v465 = vand.u32 %v464, 4294901760
    %466 = vmatpush1.msra.mxu0 %v465
    %467 = vmatprep.subr.mxu0 0.0
    %v468 = vand.u32 %v32, 4294901760
    %v469 = vsub.f32 %v32, %v468
    %v470 = vand.u32 %v469, 4294901760
    %471 = vmatpush1.msra.mxu0 %v470
    %472 = vmatprep.subr.mxu0 0.0
    %473 = vmatpush1.msra.mxu0 0.0
    %474 = vmatprep.subr.mxu0 0.0
    %475 = vmatpush1.msra.mxu0 0.0
    %476 = vmatprep.subr.mxu0 0.0
    %477 = vmatpush1.msra.mxu0 0.0
    %478 = vmatprep.subr.mxu0 0.0
    %479 = vmatpush1.msra.mxu0 0.0
    %480 = vmatprep.subr.mxu0 0.0
    %481 = vmatpush1.msra.mxu0 0.0
    %482 = vmatprep.subr.mxu0 0.0
    %483 = vmatpush1.msra.mxu0 0.0
    %484 = vmatprep.subr.mxu0 0.0
    %485 = vmatpush1.msra.mxu0 0.0
    %486 = vmatprep.subr.mxu0 0.0
    %487 = vmatpush1.msra.mxu0 0.0
    %488 = vmatprep.subr.mxu0 0.0
    %489 = vmatpush1.msra.mxu0 0.0
    %490 = vmatprep.subr.mxu0 0.0
    %491 = vmatpush1.msra.mxu0 0.0
    %492 = vmatprep.subr.mxu0 0.0
    %493 = vmatpush1.msra.mxu0 0.0
    %494 = vmatprep.subr.mxu0 0.0
    %495 = vmatpush1.msra.mxu0 0.0
    %496 = vmatprep.subr.mxu0 0.0
    %497 = vmatpush1.msra.mxu0 0.0
    %498 = vmatprep.subr.mxu0 0.0
    %499 = vmatpush1.msra.mxu0 0.0
    %500 = vmatprep.subr.mxu0 0.0
    %501 = vmatpush1.msra.mxu0 0.0
    %502 = vmatprep.subr.mxu0 0.0
    %503 = vmatpush1.msra.mxu0 0.0
    %504 = vmatprep.subr.mxu0 0.0
    %505 = vmatpush1.msra.mxu0 0.0
    %506 = vmatprep.subr.mxu0 0.0
    %507 = vmatpush1.msra.mxu0 0.0
    %508 = vmatprep.subr.mxu0 0.0
    %509 = vmatpush1.msra.mxu0 0.0
    %510 = vmatprep.subr.mxu0 0.0
    %511 = vmatpush1.msra.mxu0 0.0
    %512 = vmatprep.subr.mxu0 0.0
    %513 = vmatpush1.msra.mxu0 0.0
    %514 = vmatprep.subr.mxu0 0.0
    %515 = vmatpush1.msra.mxu0 0.0
    %516 = vmatprep.subr.mxu0 0.0
    %517 = vmatpush1.msra.mxu0 0.0
    %518 = vmatprep.subr.mxu0 0.0
    %519 = vmatpush1.msra.mxu0 0.0
    %520 = vmatprep.subr.mxu0 0.0
    %521 = vmatpush1.msra.mxu0 0.0
    %522 = vmatprep.subr.mxu0 0.0
    %523 = vmatpush1.msra.mxu0 0.0
    %524 = vmatprep.subr.mxu0 0.0
    %525 = vmatpush1.msra.mxu0 0.0
    %526 = vmatprep.subr.mxu0 0.0
    %527 = vmatpush1.msra.mxu0 0.0
    %528 = vmatprep.subr.mxu0 0.0
    %529 = vmatpush1.msra.mxu0 0.0
    %530 = vmatprep.subr.mxu0 0.0
    %531 = vmatpush1.msra.mxu0 0.0
    %532 = vmatprep.mubr.f32.mxu0 0.0
    %v533 = vand.u32 %v49, 4294901760
    %534 = vmatmul.mubr.f32.gmra.mrb[0].mxu0 %v533
    %v535 = vpop.f32.mrb[0].mxu0
    %v536 = vadd.f32 %v435, %v535
    %v537 = vpop.f32.mrb[0].mxu0
    %538 = vmatprep.mubr.f32.mxu0 0.0
    %v539 = vand.u32 %v52, 4294901760
    %540 = vmatmul.mubr.f32.gmra.mrb[0].mxu0 %v539
    %v541 = vpop.f32.mrb[0].mxu0
    %v542 = vadd.f32 %v443, %v541
    %v543 = vpop.f32.mrb[0].mxu0
    %544 = vmatprep.mubr.f32.mxu0 0.0
    %v545 = vand.u32 %v55, 4294901760
    %546 = vmatmul.mubr.f32.gmra.mrb[0].mxu0 %v545
    %v547 = vpop.f32.mrb[0].mxu0
    %v548 = vadd.f32 %v451, %v547
    %v549 = vpop.f32.mrb[0].mxu0
    %550 = vmatprep.mubr.f32.mxu0 0.0
    %v551 = vand.u32 %v58, 4294901760
    %552 = vmatmul.mubr.f32.gmra.mrb[0].mxu0 %v551
    %v553 = vpop.f32.mrb[0].mxu0
    %v554 = vadd.f32 %v459, %v553
    %v555 = vpop.f32.mrb[0].mxu0
    %556 = vdwg.mxu0
    %557 = vmatprep.subr.mxu0 0.0
    %v558 = vand.u32 %v31, 4294901760
    %559 = vmatpush1.msra.mxu0 %v558
    %560 = vmatprep.subr.mxu0 0.0
    %v561 = vand.u32 %v32, 4294901760
    %562 = vmatpush1.msra.mxu0 %v561
    %563 = vmatprep.subr.mxu0 0.0
    %564 = vmatpush1.msra.mxu0 0.0
    %565 = vmatprep.subr.mxu0 0.0
    %566 = vmatpush1.msra.mxu0 0.0
    %567 = vmatprep.subr.mxu0 0.0
    %568 = vmatpush1.msra.mxu0 0.0
    %569 = vmatprep.subr.mxu0 0.0
    %570 = vmatpush1.msra.mxu0 0.0
    %571 = vmatprep.subr.mxu0 0.0
    %572 = vmatpush1.msra.mxu0 0.0
    %573 = vmatprep.subr.mxu0 0.0
    %574 = vmatpush1.msra.mxu0 0.0
    %575 = vmatprep.subr.mxu0 0.0
    %576 = vmatpush1.msra.mxu0 0.0
    %577 = vmatprep.subr.mxu0 0.0
    %578 = vmatpush1.msra.mxu0 0.0
    %579 = vmatprep.subr.mxu0 0.0
    %580 = vmatpush1.msra.mxu0 0.0
    %581 = vmatprep.subr.mxu0 0.0
    %582 = vmatpush1.msra.mxu0 0.0
    %583 = vmatprep.subr.mxu0 0.0
    %584 = vmatpush1.msra.mxu0 0.0
    %585 = vmatprep.subr.mxu0 0.0
    %586 = vmatpush1.msra.mxu0 0.0
    %587 = vmatprep.subr.mxu0 0.0
    %588 = vmatpush1.msra.mxu0 0.0
    %589 = vmatprep.subr.mxu0 0.0
    %590 = vmatpush1.msra.mxu0 0.0
    %591 = vmatprep.subr.mxu0 0.0
    %592 = vmatpush1.msra.mxu0 0.0
    %593 = vmatprep.subr.mxu0 0.0
    %594 = vmatpush1.msra.mxu0 0.0
    %595 = vmatprep.subr.mxu0 0.0
    %596 = vmatpush1.msra.mxu0 0.0
    %597 = vmatprep.subr.mxu0 0.0
    %598 = vmatpush1.msra.mxu0 0.0
    %599 = vmatprep.subr.mxu0 0.0
    %600 = vmatpush1.msra.mxu0 0.0
    %601 = vmatprep.subr.mxu0 0.0
    %602 = vmatpush1.msra.mxu0 0.0
    %603 = vmatprep.subr.mxu0 0.0
    %604 = vmatpush1.msra.mxu0 0.0
    %605 = vmatprep.subr.mxu0 0.0
    %606 = vmatpush1.msra.mxu0 0.0
    %607 = vmatprep.subr.mxu0 0.0
    %608 = vmatpush1.msra.mxu0 0.0
    %609 = vmatprep.subr.mxu0 0.0
    %610 = vmatpush1.msra.mxu0 0.0
    %611 = vmatprep.subr.mxu0 0.0
    %612 = vmatpush1.msra.mxu0 0.0
    %613 = vmatprep.subr.mxu0 0.0
    %614 = vmatpush1.msra.mxu0 0.0
    %615 = vmatprep.subr.mxu0 0.0
    %616 = vmatpush1.msra.mxu0 0.0
    %617 = vmatprep.subr.mxu0 0.0
    %618 = vmatpush1.msra.mxu0 0.0
    %619 = vmatprep.subr.mxu0 0.0
    %620 = vmatpush1.msra.mxu0 0.0
    %621 = vmatprep.subr.mxu0 0.0
    %622 = vmatpush1.msra.mxu0 0.0
    %623 = vmatprep.mubr.f32.mxu0 0.0
    %v624 = vand.u32 %v49, 4294901760
    %625 = vmatmul.mubr.f32.gmra.mrb[0].mxu0 %v624
    %v626 = vpop.f32.mrb[0].mxu0
    %v627 = vadd.f32 %v536, %v626
    %v628 = vpop.f32.mrb[0].mxu0
    %629 = vmatprep.mubr.f32.mxu0 0.0
    %v630 = vand.u32 %v52, 4294901760
    %631 = vmatmul.mubr.f32.gmra.mrb[0].mxu0 %v630
    %v632 = vpop.f32.mrb[0].mxu0
    %v633 = vadd.f32 %v542, %v632
    %v634 = vpop.f32.mrb[0].mxu0
    %635 = vmatprep.mubr.f32.mxu0 0.0
    %v636 = vand.u32 %v55, 4294901760
    %637 = vmatmul.mubr.f32.gmra.mrb[0].mxu0 %v636
    %v638 = vpop.f32.mrb[0].mxu0
    %v639 = vadd.f32 %v548, %v638
    %v640 = vpop.f32.mrb[0].mxu0
    %641 = vmatprep.mubr.f32.mxu0 0.0
    %v642 = vand.u32 %v58, 4294901760
    %643 = vmatmul.mubr.f32.gmra.mrb[0].mxu0 %v642
    %v644 = vpop.f32.mrb[0].mxu0
    %v645 = vadd.f32 %v554, %v644
    %v646 = vpop.f32.mrb[0].mxu0
    %647 = vdwg.mxu0
    %v648 = vld [vmem:[%s3] sm:$0xff]
    %v649 = vld [vmem:[%s3 + $0x8] sm:$0xff]
    %v650 = vld [vmem:[%s3 + $0x10] sm:$0xff]
    %v651 = vld [vmem:[%s3 + $0x18] sm:$0xff]
    %vm652 = vcmask 97280
    %v654 = vsel %vm652, %v648, 0
    %v657 = vsel %vm652, %v649, 0
    %v660 = vsel %vm652, %v650, 0
    %v663 = vsel %vm652, %v651, 0
    %vm665 = vcmask 1043456
    %v667 = vsel %vm665, %v42, 0
    %669 = vmatprep.subr.mxu0 0.0
    %v670 = vand.u32 %v41, 4294901760
    %671 = vmatpush1.msra.mxu0 %v670
    %672 = vmatprep.subr.mxu0 0.0
    %v673 = vand.u32 %v667, 4294901760
    %674 = vmatpush1.msra.mxu0 %v673
    %675 = vmatprep.subr.mxu0 0.0
    %676 = vmatpush1.msra.mxu0 0.0
    %677 = vmatprep.subr.mxu0 0.0
    %678 = vmatpush1.msra.mxu0 0.0
    %679 = vmatprep.subr.mxu0 0.0
    %680 = vmatpush1.msra.mxu0 0.0
    %681 = vmatprep.subr.mxu0 0.0
    %682 = vmatpush1.msra.mxu0 0.0
    %683 = vmatprep.subr.mxu0 0.0
    %684 = vmatpush1.msra.mxu0 0.0
    %685 = vmatprep.subr.mxu0 0.0
    %686 = vmatpush1.msra.mxu0 0.0
    %687 = vmatprep.subr.mxu0 0.0
    %688 = vmatpush1.msra.mxu0 0.0
    %689 = vmatprep.subr.mxu0 0.0
    %690 = vmatpush1.msra.mxu0 0.0
    %691 = vmatprep.subr.mxu0 0.0
    %692 = vmatpush1.msra.mxu0 0.0
    %693 = vmatprep.subr.mxu0 0.0
    %694 = vmatpush1.msra.mxu0 0.0
    %695 = vmatprep.subr.mxu0 0.0
    %696 = vmatpush1.msra.mxu0 0.0
    %697 = vmatprep.subr.mxu0 0.0
    %698 = vmatpush1.msra.mxu0 0.0
    %699 = vmatprep.subr.mxu0 0.0
    %700 = vmatpush1.msra.mxu0 0.0
    %701 = vmatprep.subr.mxu0 0.0
    %702 = vmatpush1.msra.mxu0 0.0
    %703 = vmatprep.subr.mxu0 0.0
    %704 = vmatpush1.msra.mxu0 0.0
    %705 = vmatprep.subr.mxu0 0.0
    %706 = vmatpush1.msra.mxu0 0.0
    %707 = vmatprep.subr.mxu0 0.0
    %708 = vmatpush1.msra.mxu0 0.0
    %709 = vmatprep.subr.mxu0 0.0
    %710 = vmatpush1.msra.mxu0 0.0
    %711 = vmatprep.subr.mxu0 0.0
    %712 = vmatpush1.msra.mxu0 0.0
    %713 = vmatprep.subr.mxu0 0.0
    %714 = vmatpush1.msra.mxu0 0.0
    %715 = vmatprep.subr.mxu0 0.0
    %716 = vmatpush1.msra.mxu0 0.0
    %717 = vmatprep.subr.mxu0 0.0
    %718 = vmatpush1.msra.mxu0 0.0
    %719 = vmatprep.subr.mxu0 0.0
    %720 = vmatpush1.msra.mxu0 0.0
    %721 = vmatprep.subr.mxu0 0.0
    %722 = vmatpush1.msra.mxu0 0.0
    %723 = vmatprep.subr.mxu0 0.0
    %724 = vmatpush1.msra.mxu0 0.0
    %725 = vmatprep.subr.mxu0 0.0
    %726 = vmatpush1.msra.mxu0 0.0
    %727 = vmatprep.subr.mxu0 0.0
    %728 = vmatpush1.msra.mxu0 0.0
    %729 = vmatprep.subr.mxu0 0.0
    %730 = vmatpush1.msra.mxu0 0.0
    %731 = vmatprep.subr.mxu0 0.0
    %732 = vmatpush1.msra.mxu0 0.0
    %733 = vmatprep.subr.mxu0 0.0
    %734 = vmatpush1.msra.mxu0 0.0
    %735 = vmatprep.mubr.f32.mxu0 0.0
    %v736 = vand.u32 %v654, 4294901760
    %v737 = vsub.f32 %v654, %v736
    %v738 = vand.u32 %v737, 4294901760
    %v739 = vsub.f32 %v737, %v738
    %v740 = vand.u32 %v739, 4294901760
    %741 = vmatmul.mubr.f32.gmra.mrb[0].mxu0 %v740
    %v742 = vpop.f32.mrb[0].mxu0
    %v743 = vadd.f32 0.0, %v742
    %v744 = vpop.f32.mrb[0].mxu0
    %745 = vmatprep.mubr.f32.mxu0 0.0
    %v746 = vand.u32 %v657, 4294901760
    %v747 = vsub.f32 %v657, %v746
    %v748 = vand.u32 %v747, 4294901760
    %v749 = vsub.f32 %v747, %v748
    %v750 = vand.u32 %v749, 4294901760
    %751 = vmatmul.mubr.f32.gmra.mrb[0].mxu0 %v750
    %v752 = vpop.f32.mrb[0].mxu0
    %v753 = vadd.f32 0.0, %v752
    %v754 = vpop.f32.mrb[0].mxu0
    %755 = vmatprep.mubr.f32.mxu0 0.0
    %v756 = vand.u32 %v660, 4294901760
    %v757 = vsub.f32 %v660, %v756
    %v758 = vand.u32 %v757, 4294901760
    %v759 = vsub.f32 %v757, %v758
    %v760 = vand.u32 %v759, 4294901760
    %761 = vmatmul.mubr.f32.gmra.mrb[0].mxu0 %v760
    %v762 = vpop.f32.mrb[0].mxu0
    %v763 = vadd.f32 0.0, %v762
    %v764 = vpop.f32.mrb[0].mxu0
    %765 = vmatprep.mubr.f32.mxu0 0.0
    %v766 = vand.u32 %v663, 4294901760
    %v767 = vsub.f32 %v663, %v766
    %v768 = vand.u32 %v767, 4294901760
    %v769 = vsub.f32 %v767, %v768
    %v770 = vand.u32 %v769, 4294901760
    %771 = vmatmul.mubr.f32.gmra.mrb[0].mxu0 %v770
    %v772 = vpop.f32.mrb[0].mxu0
    %v773 = vadd.f32 0.0, %v772
    %v774 = vpop.f32.mrb[0].mxu0
    %775 = vdwg.mxu0
    %776 = vmatprep.subr.mxu0 0.0
    %v777 = vand.u32 %v41, 4294901760
    %v778 = vsub.f32 %v41, %v777
    %v779 = vand.u32 %v778, 4294901760
    %v780 = vsub.f32 %v778, %v779
    %v781 = vand.u32 %v780, 4294901760
    %782 = vmatpush1.msra.mxu0 %v781
    %783 = vmatprep.subr.mxu0 0.0
    %v784 = vand.u32 %v667, 4294901760
    %v785 = vsub.f32 %v667, %v784
    %v786 = vand.u32 %v785, 4294901760
    %v787 = vsub.f32 %v785, %v786
    %v788 = vand.u32 %v787, 4294901760
    %789 = vmatpush1.msra.mxu0 %v788
    %790 = vmatprep.subr.mxu0 0.0
    %791 = vmatpush1.msra.mxu0 0.0
    %792 = vmatprep.subr.mxu0 0.0
    %793 = vmatpush1.msra.mxu0 0.0
    %794 = vmatprep.subr.mxu0 0.0
    %795 = vmatpush1.msra.mxu0 0.0
    %796 = vmatprep.subr.mxu0 0.0
    %797 = vmatpush1.msra.mxu0 0.0
    %798 = vmatprep.subr.mxu0 0.0
    %799 = vmatpush1.msra.mxu0 0.0
    %800 = vmatprep.subr.mxu0 0.0
    %801 = vmatpush1.msra.mxu0 0.0
    %802 = vmatprep.subr.mxu0 0.0
    %803 = vmatpush1.msra.mxu0 0.0
    %804 = vmatprep.subr.mxu0 0.0
    %805 = vmatpush1.msra.mxu0 0.0
    %806 = vmatprep.subr.mxu0 0.0
    %807 = vmatpush1.msra.mxu0 0.0
    %808 = vmatprep.subr.mxu0 0.0
    %809 = vmatpush1.msra.mxu0 0.0
    %810 = vmatprep.subr.mxu0 0.0
    %811 = vmatpush1.msra.mxu0 0.0
    %812 = vmatprep.subr.mxu0 0.0
    %813 = vmatpush1.msra.mxu0 0.0
    %814 = vmatprep.subr.mxu0 0.0
    %815 = vmatpush1.msra.mxu0 0.0
    %816 = vmatprep.subr.mxu0 0.0
    %817 = vmatpush1.msra.mxu0 0.0
    %818 = vmatprep.subr.mxu0 0.0
    %819 = vmatpush1.msra.mxu0 0.0
    %820 = vmatprep.subr.mxu0 0.0
    %821 = vmatpush1.msra.mxu0 0.0
    %822 = vmatprep.subr.mxu0 0.0
    %823 = vmatpush1.msra.mxu0 0.0
    %824 = vmatprep.subr.mxu0 0.0
    %825 = vmatpush1.msra.mxu0 0.0
    %826 = vmatprep.subr.mxu0 0.0
    %827 = vmatpush1.msra.mxu0 0.0
    %828 = vmatprep.subr.mxu0 0.0
    %829 = vmatpush1.msra.mxu0 0.0
    %830 = vmatprep.subr.mxu0 0.0
    %831 = vmatpush1.msra.mxu0 0.0
    %832 = vmatprep.subr.mxu0 0.0
    %833 = vmatpush1.msra.mxu0 0.0
    %834 = vmatprep.subr.mxu0 0.0
    %835 = vmatpush1.msra.mxu0 0.0
    %836 = vmatprep.subr.mxu0 0.0
    %837 = vmatpush1.msra.mxu0 0.0
    %838 = vmatprep.subr.mxu0 0.0
    %839 = vmatpush1.msra.mxu0 0.0
    %840 = vmatprep.subr.mxu0 0.0
    %841 = vmatpush1.msra.mxu0 0.0
    %842 = vmatprep.subr.mxu0 0.0
    %843 = vmatpush1.msra.mxu0 0.0
    %844 = vmatprep.subr.mxu0 0.0
    %845 = vmatpush1.msra.mxu0 0.0
    %846 = vmatprep.subr.mxu0 0.0
    %847 = vmatpush1.msra.mxu0 0.0
    %848 = vmatprep.subr.mxu0 0.0
    %849 = vmatpush1.msra.mxu0 0.0
    %850 = vmatprep.mubr.f32.mxu0 0.0
    %v851 = vand.u32 %v654, 4294901760
    %852 = vmatmul.mubr.f32.gmra.mrb[0].mxu0 %v851
    %v853 = vpop.f32.mrb[0].mxu0
    %v854 = vadd.f32 %v743, %v853
    %v855 = vpop.f32.mrb[0].mxu0
    %856 = vmatprep.mubr.f32.mxu0 0.0
    %v857 = vand.u32 %v657, 4294901760
    %858 = vmatmul.mubr.f32.gmra.mrb[0].mxu0 %v857
    %v859 = vpop.f32.mrb[0].mxu0
    %v860 = vadd.f32 %v753, %v859
    %v861 = vpop.f32.mrb[0].mxu0
    %862 = vmatprep.mubr.f32.mxu0 0.0
    %v863 = vand.u32 %v660, 4294901760
    %864 = vmatmul.mubr.f32.gmra.mrb[0].mxu0 %v863
    %v865 = vpop.f32.mrb[0].mxu0
    %v866 = vadd.f32 %v763, %v865
    %v867 = vpop.f32.mrb[0].mxu0
    %868 = vmatprep.mubr.f32.mxu0 0.0
    %v869 = vand.u32 %v663, 4294901760
    %870 = vmatmul.mubr.f32.gmra.mrb[0].mxu0 %v869
    %v871 = vpop.f32.mrb[0].mxu0
    %v872 = vadd.f32 %v773, %v871
    %v873 = vpop.f32.mrb[0].mxu0
    %874 = vdwg.mxu0
    %875 = vmatprep.subr.mxu0 0.0
    %v876 = vand.u32 %v41, 4294901760
    %v877 = vsub.f32 %v41, %v876
    %878 = vmatpush1.msra.mxu0 %v877
    %879 = vmatprep.subr.mxu0 0.0
    %v880 = vand.u32 %v667, 4294901760
    %v881 = vsub.f32 %v667, %v880
    %882 = vmatpush1.msra.mxu0 %v881
    %883 = vmatprep.subr.mxu0 0.0
    %884 = vmatpush1.msra.mxu0 0.0
    %885 = vmatprep.subr.mxu0 0.0
    %886 = vmatpush1.msra.mxu0 0.0
    %887 = vmatprep.subr.mxu0 0.0
    %888 = vmatpush1.msra.mxu0 0.0
    %889 = vmatprep.subr.mxu0 0.0
    %890 = vmatpush1.msra.mxu0 0.0
    %891 = vmatprep.subr.mxu0 0.0
    %892 = vmatpush1.msra.mxu0 0.0
    %893 = vmatprep.subr.mxu0 0.0
    %894 = vmatpush1.msra.mxu0 0.0
    %895 = vmatprep.subr.mxu0 0.0
    %896 = vmatpush1.msra.mxu0 0.0
    %897 = vmatprep.subr.mxu0 0.0
    %898 = vmatpush1.msra.mxu0 0.0
    %899 = vmatprep.subr.mxu0 0.0
    %900 = vmatpush1.msra.mxu0 0.0
    %901 = vmatprep.subr.mxu0 0.0
    %902 = vmatpush1.msra.mxu0 0.0
    %903 = vmatprep.subr.mxu0 0.0
    %904 = vmatpush1.msra.mxu0 0.0
    %905 = vmatprep.subr.mxu0 0.0
    %906 = vmatpush1.msra.mxu0 0.0
    %907 = vmatprep.subr.mxu0 0.0
    %908 = vmatpush1.msra.mxu0 0.0
    %909 = vmatprep.subr.mxu0 0.0
    %910 = vmatpush1.msra.mxu0 0.0
    %911 = vmatprep.subr.mxu0 0.0
    %912 = vmatpush1.msra.mxu0 0.0
    %913 = vmatprep.subr.mxu0 0.0
    %914 = vmatpush1.msra.mxu0 0.0
    %915 = vmatprep.subr.mxu0 0.0
    %916 = vmatpush1.msra.mxu0 0.0
    %917 = vmatprep.subr.mxu0 0.0
    %918 = vmatpush1.msra.mxu0 0.0
    %919 = vmatprep.subr.mxu0 0.0
    %920 = vmatpush1.msra.mxu0 0.0
    %921 = vmatprep.subr.mxu0 0.0
    %922 = vmatpush1.msra.mxu0 0.0
    %923 = vmatprep.subr.mxu0 0.0
    %924 = vmatpush1.msra.mxu0 0.0
    %925 = vmatprep.subr.mxu0 0.0
    %926 = vmatpush1.msra.mxu0 0.0
    %927 = vmatprep.subr.mxu0 0.0
    %928 = vmatpush1.msra.mxu0 0.0
    %929 = vmatprep.subr.mxu0 0.0
    %930 = vmatpush1.msra.mxu0 0.0
    %931 = vmatprep.subr.mxu0 0.0
    %932 = vmatpush1.msra.mxu0 0.0
    %933 = vmatprep.subr.mxu0 0.0
    %934 = vmatpush1.msra.mxu0 0.0
    %935 = vmatprep.subr.mxu0 0.0
    %936 = vmatpush1.msra.mxu0 0.0
    %937 = vmatprep.subr.mxu0 0.0
    %938 = vmatpush1.msra.mxu0 0.0
    %939 = vmatprep.subr.mxu0 0.0
    %940 = vmatpush1.msra.mxu0 0.0
    %941 = vmatprep.subr.mxu0 0.0
    %942 = vmatpush1.msra.mxu0 0.0
    %943 = vmatprep.mubr.f32.mxu0 0.0
    %v944 = vand.u32 %v654, 4294901760
    %v945 = vsub.f32 %v654, %v944
    %946 = vmatmul.mubr.f32.gmra.mrb[0].mxu0 %v945
    %v947 = vpop.f32.mrb[0].mxu0
    %v948 = vadd.f32 %v854, %v947
    %v949 = vpop.f32.mrb[0].mxu0
    %950 = vmatprep.mubr.f32.mxu0 0.0
    %v951 = vand.u32 %v657, 4294901760
    %v952 = vsub.f32 %v657, %v951
    %953 = vmatmul.mubr.f32.gmra.mrb[0].mxu0 %v952
    %v954 = vpop.f32.mrb[0].mxu0
    %v955 = vadd.f32 %v860, %v954
    %v956 = vpop.f32.mrb[0].mxu0
    %957 = vmatprep.mubr.f32.mxu0 0.0
    %v958 = vand.u32 %v660, 4294901760
    %v959 = vsub.f32 %v660, %v958
    %960 = vmatmul.mubr.f32.gmra.mrb[0].mxu0 %v959
    %v961 = vpop.f32.mrb[0].mxu0
    %v962 = vadd.f32 %v866, %v961
    %v963 = vpop.f32.mrb[0].mxu0
    %964 = vmatprep.mubr.f32.mxu0 0.0
    %v965 = vand.u32 %v663, 4294901760
    %v966 = vsub.f32 %v663, %v965
    %967 = vmatmul.mubr.f32.gmra.mrb[0].mxu0 %v966
    %v968 = vpop.f32.mrb[0].mxu0
    %v969 = vadd.f32 %v872, %v968
    %v970 = vpop.f32.mrb[0].mxu0
    %971 = vdwg.mxu0
    %972 = vmatprep.subr.mxu0 0.0
    %v973 = vand.u32 %v41, 4294901760
    %974 = vmatpush1.msra.mxu0 %v973
    %975 = vmatprep.subr.mxu0 0.0
    %v976 = vand.u32 %v667, 4294901760
    %977 = vmatpush1.msra.mxu0 %v976
    %978 = vmatprep.subr.mxu0 0.0
    %979 = vmatpush1.msra.mxu0 0.0
    %980 = vmatprep.subr.mxu0 0.0
    %981 = vmatpush1.msra.mxu0 0.0
    %982 = vmatprep.subr.mxu0 0.0
    %983 = vmatpush1.msra.mxu0 0.0
    %984 = vmatprep.subr.mxu0 0.0
    %985 = vmatpush1.msra.mxu0 0.0
    %986 = vmatprep.subr.mxu0 0.0
    %987 = vmatpush1.msra.mxu0 0.0
    %988 = vmatprep.subr.mxu0 0.0
    %989 = vmatpush1.msra.mxu0 0.0
    %990 = vmatprep.subr.mxu0 0.0
    %991 = vmatpush1.msra.mxu0 0.0
    %992 = vmatprep.subr.mxu0 0.0
    %993 = vmatpush1.msra.mxu0 0.0
    %994 = vmatprep.subr.mxu0 0.0
    %995 = vmatpush1.msra.mxu0 0.0
    %996 = vmatprep.subr.mxu0 0.0
    %997 = vmatpush1.msra.mxu0 0.0
    %998 = vmatprep.subr.mxu0 0.0
    %999 = vmatpush1.msra.mxu0 0.0
    %1000 = vmatprep.subr.mxu0 0.0
    %1001 = vmatpush1.msra.mxu0 0.0
    %1002 = vmatprep.subr.mxu0 0.0
    %1003 = vmatpush1.msra.mxu0 0.0
    %1004 = vmatprep.subr.mxu0 0.0
    %1005 = vmatpush1.msra.mxu0 0.0
    %1006 = vmatprep.subr.mxu0 0.0
    %1007 = vmatpush1.msra.mxu0 0.0
    %1008 = vmatprep.subr.mxu0 0.0
    %1009 = vmatpush1.msra.mxu0 0.0
    %1010 = vmatprep.subr.mxu0 0.0
    %1011 = vmatpush1.msra.mxu0 0.0
    %1012 = vmatprep.subr.mxu0 0.0
    %1013 = vmatpush1.msra.mxu0 0.0
    %1014 = vmatprep.subr.mxu0 0.0
    %1015 = vmatpush1.msra.mxu0 0.0
    %1016 = vmatprep.subr.mxu0 0.0
    %1017 = vmatpush1.msra.mxu0 0.0
    %1018 = vmatprep.subr.mxu0 0.0
    %1019 = vmatpush1.msra.mxu0 0.0
    %1020 = vmatprep.subr.mxu0 0.0
    %1021 = vmatpush1.msra.mxu0 0.0
    %1022 = vmatprep.subr.mxu0 0.0
    %1023 = vmatpush1.msra.mxu0 0.0
    %1024 = vmatprep.subr.mxu0 0.0
    %1025 = vmatpush1.msra.mxu0 0.0
    %1026 = vmatprep.subr.mxu0 0.0
    %1027 = vmatpush1.msra.mxu0 0.0
    %1028 = vmatprep.subr.mxu0 0.0
    %1029 = vmatpush1.msra.mxu0 0.0
    %1030 = vmatprep.subr.mxu0 0.0
    %1031 = vmatpush1.msra.mxu0 0.0
    %1032 = vmatprep.subr.mxu0 0.0
    %1033 = vmatpush1.msra.mxu0 0.0
    %1034 = vmatprep.subr.mxu0 0.0
    %1035 = vmatpush1.msra.mxu0 0.0
    %1036 = vmatprep.subr.mxu0 0.0
    %1037 = vmatpush1.msra.mxu0 0.0
    %1038 = vmatprep.mubr.f32.mxu0 0.0
    %v1039 = vand.u32 %v654, 4294901760
    %v1040 = vsub.f32 %v654, %v1039
    %v1041 = vand.u32 %v1040, 4294901760
    %1042 = vmatmul.mubr.f32.gmra.mrb[0].mxu0 %v1041
    %v1043 = vpop.f32.mrb[0].mxu0
    %v1044 = vadd.f32 %v948, %v1043
    %v1045 = vpop.f32.mrb[0].mxu0
    %1046 = vmatprep.mubr.f32.mxu0 0.0
    %v1047 = vand.u32 %v657, 4294901760
    %v1048 = vsub.f32 %v657, %v1047
    %v1049 = vand.u32 %v1048, 4294901760
    %1050 = vmatmul.mubr.f32.gmra.mrb[0].mxu0 %v1049
    %v1051 = vpop.f32.mrb[0].mxu0
    %v1052 = vadd.f32 %v955, %v1051
    %v1053 = vpop.f32.mrb[0].mxu0
    %1054 = vmatprep.mubr.f32.mxu0 0.0
    %v1055 = vand.u32 %v660, 4294901760
    %v1056 = vsub.f32 %v660, %v1055
    %v1057 = vand.u32 %v1056, 4294901760
    %1058 = vmatmul.mubr.f32.gmra.mrb[0].mxu0 %v1057
    %v1059 = vpop.f32.mrb[0].mxu0
    %v1060 = vadd.f32 %v962, %v1059
    %v1061 = vpop.f32.mrb[0].mxu0
    %1062 = vmatprep.mubr.f32.mxu0 0.0
    %v1063 = vand.u32 %v663, 4294901760
    %v1064 = vsub.f32 %v663, %v1063
    %v1065 = vand.u32 %v1064, 4294901760
    %1066 = vmatmul.mubr.f32.gmra.mrb[0].mxu0 %v1065
    %v1067 = vpop.f32.mrb[0].mxu0
    %v1068 = vadd.f32 %v969, %v1067
    %v1069 = vpop.f32.mrb[0].mxu0
    %1070 = vdwg.mxu0
    %1071 = vmatprep.subr.mxu0 0.0
    %v1072 = vand.u32 %v41, 4294901760
    %v1073 = vsub.f32 %v41, %v1072
    %v1074 = vand.u32 %v1073, 4294901760
    %1075 = vmatpush1.msra.mxu0 %v1074
    %1076 = vmatprep.subr.mxu0 0.0
    %v1077 = vand.u32 %v667, 4294901760
    %v1078 = vsub.f32 %v667, %v1077
    %v1079 = vand.u32 %v1078, 4294901760
    %1080 = vmatpush1.msra.mxu0 %v1079
    %1081 = vmatprep.subr.mxu0 0.0
    %1082 = vmatpush1.msra.mxu0 0.0
    %1083 = vmatprep.subr.mxu0 0.0
    %1084 = vmatpush1.msra.mxu0 0.0
    %1085 = vmatprep.subr.mxu0 0.0
    %1086 = vmatpush1.msra.mxu0 0.0
    %1087 = vmatprep.subr.mxu0 0.0
    %1088 = vmatpush1.msra.mxu0 0.0
    %1089 = vmatprep.subr.mxu0 0.0
    %1090 = vmatpush1.msra.mxu0 0.0
    %1091 = vmatprep.subr.mxu0 0.0
    %1092 = vmatpush1.msra.mxu0 0.0
    %1093 = vmatprep.subr.mxu0 0.0
    %1094 = vmatpush1.msra.mxu0 0.0
    %1095 = vmatprep.subr.mxu0 0.0
    %1096 = vmatpush1.msra.mxu0 0.0
    %1097 = vmatprep.subr.mxu0 0.0
    %1098 = vmatpush1.msra.mxu0 0.0
    %1099 = vmatprep.subr.mxu0 0.0
    %1100 = vmatpush1.msra.mxu0 0.0
    %1101 = vmatprep.subr.mxu0 0.0
    %1102 = vmatpush1.msra.mxu0 0.0
    %1103 = vmatprep.subr.mxu0 0.0
    %1104 = vmatpush1.msra.mxu0 0.0
    %1105 = vmatprep.subr.mxu0 0.0
    %1106 = vmatpush1.msra.mxu0 0.0
    %1107 = vmatprep.subr.mxu0 0.0
    %1108 = vmatpush1.msra.mxu0 0.0
    %1109 = vmatprep.subr.mxu0 0.0
    %1110 = vmatpush1.msra.mxu0 0.0
    %1111 = vmatprep.subr.mxu0 0.0
    %1112 = vmatpush1.msra.mxu0 0.0
    %1113 = vmatprep.subr.mxu0 0.0
    %1114 = vmatpush1.msra.mxu0 0.0
    %1115 = vmatprep.subr.mxu0 0.0
    %1116 = vmatpush1.msra.mxu0 0.0
    %1117 = vmatprep.subr.mxu0 0.0
    %1118 = vmatpush1.msra.mxu0 0.0
    %1119 = vmatprep.subr.mxu0 0.0
    %1120 = vmatpush1.msra.mxu0 0.0
    %1121 = vmatprep.subr.mxu0 0.0
    %1122 = vmatpush1.msra.mxu0 0.0
    %1123 = vmatprep.subr.mxu0 0.0
    %1124 = vmatpush1.msra.mxu0 0.0
    %1125 = vmatprep.subr.mxu0 0.0
    %1126 = vmatpush1.msra.mxu0 0.0
    %1127 = vmatprep.subr.mxu0 0.0
    %1128 = vmatpush1.msra.mxu0 0.0
    %1129 = vmatprep.subr.mxu0 0.0
    %1130 = vmatpush1.msra.mxu0 0.0
    %1131 = vmatprep.subr.mxu0 0.0
    %1132 = vmatpush1.msra.mxu0 0.0
    %1133 = vmatprep.subr.mxu0 0.0
    %1134 = vmatpush1.msra.mxu0 0.0
    %1135 = vmatprep.subr.mxu0 0.0
    %1136 = vmatpush1.msra.mxu0 0.0
    %1137 = vmatprep.subr.mxu0 0.0
    %1138 = vmatpush1.msra.mxu0 0.0
    %1139 = vmatprep.subr.mxu0 0.0
    %1140 = vmatpush1.msra.mxu0 0.0
    %1141 = vmatprep.mubr.f32.mxu0 0.0
    %v1142 = vand.u32 %v654, 4294901760
    %1143 = vmatmul.mubr.f32.gmra.mrb[0].mxu0 %v1142
    %v1144 = vpop.f32.mrb[0].mxu0
    %v1145 = vadd.f32 %v1044, %v1144
    %v1146 = vpop.f32.mrb[0].mxu0
    %1147 = vmatprep.mubr.f32.mxu0 0.0
    %v1148 = vand.u32 %v657, 4294901760
    %1149 = vmatmul.mubr.f32.gmra.mrb[0].mxu0 %v1148
    %v1150 = vpop.f32.mrb[0].mxu0
    %v1151 = vadd.f32 %v1052, %v1150
    %v1152 = vpop.f32.mrb[0].mxu0
    %1153 = vmatprep.mubr.f32.mxu0 0.0
    %v1154 = vand.u32 %v660, 4294901760
    %1155 = vmatmul.mubr.f32.gmra.mrb[0].mxu0 %v1154
    %v1156 = vpop.f32.mrb[0].mxu0
    %v1157 = vadd.f32 %v1060, %v1156
    %v1158 = vpop.f32.mrb[0].mxu0
    %1159 = vmatprep.mubr.f32.mxu0 0.0
    %v1160 = vand.u32 %v663, 4294901760
    %1161 = vmatmul.mubr.f32.gmra.mrb[0].mxu0 %v1160
    %v1162 = vpop.f32.mrb[0].mxu0
    %v1163 = vadd.f32 %v1068, %v1162
    %v1164 = vpop.f32.mrb[0].mxu0
    %1165 = vdwg.mxu0
    %1166 = vmatprep.subr.mxu0 0.0
    %v1167 = vand.u32 %v41, 4294901760
    %1168 = vmatpush1.msra.mxu0 %v1167
    %1169 = vmatprep.subr.mxu0 0.0
    %v1170 = vand.u32 %v667, 4294901760
    %1171 = vmatpush1.msra.mxu0 %v1170
    %1172 = vmatprep.subr.mxu0 0.0
    %1173 = vmatpush1.msra.mxu0 0.0
    %1174 = vmatprep.subr.mxu0 0.0
    %1175 = vmatpush1.msra.mxu0 0.0
    %1176 = vmatprep.subr.mxu0 0.0
    %1177 = vmatpush1.msra.mxu0 0.0
    %1178 = vmatprep.subr.mxu0 0.0
    %1179 = vmatpush1.msra.mxu0 0.0
    %1180 = vmatprep.subr.mxu0 0.0
    %1181 = vmatpush1.msra.mxu0 0.0
    %1182 = vmatprep.subr.mxu0 0.0
    %1183 = vmatpush1.msra.mxu0 0.0
    %1184 = vmatprep.subr.mxu0 0.0
    %1185 = vmatpush1.msra.mxu0 0.0
    %1186 = vmatprep.subr.mxu0 0.0
    %1187 = vmatpush1.msra.mxu0 0.0
    %1188 = vmatprep.subr.mxu0 0.0
    %1189 = vmatpush1.msra.mxu0 0.0
    %1190 = vmatprep.subr.mxu0 0.0
    %1191 = vmatpush1.msra.mxu0 0.0
    %1192 = vmatprep.subr.mxu0 0.0
    %1193 = vmatpush1.msra.mxu0 0.0
    %1194 = vmatprep.subr.mxu0 0.0
    %1195 = vmatpush1.msra.mxu0 0.0
    %1196 = vmatprep.subr.mxu0 0.0
    %1197 = vmatpush1.msra.mxu0 0.0
    %1198 = vmatprep.subr.mxu0 0.0
    %1199 = vmatpush1.msra.mxu0 0.0
    %1200 = vmatprep.subr.mxu0 0.0
    %1201 = vmatpush1.msra.mxu0 0.0
    %1202 = vmatprep.subr.mxu0 0.0
    %1203 = vmatpush1.msra.mxu0 0.0
    %1204 = vmatprep.subr.mxu0 0.0
    %1205 = vmatpush1.msra.mxu0 0.0
    %1206 = vmatprep.subr.mxu0 0.0
    %1207 = vmatpush1.msra.mxu0 0.0
    %1208 = vmatprep.subr.mxu0 0.0
    %1209 = vmatpush1.msra.mxu0 0.0
    %1210 = vmatprep.subr.mxu0 0.0
    %1211 = vmatpush1.msra.mxu0 0.0
    %1212 = vmatprep.subr.mxu0 0.0
    %1213 = vmatpush1.msra.mxu0 0.0
    %1214 = vmatprep.subr.mxu0 0.0
    %1215 = vmatpush1.msra.mxu0 0.0
    %1216 = vmatprep.subr.mxu0 0.0
    %1217 = vmatpush1.msra.mxu0 0.0
    %1218 = vmatprep.subr.mxu0 0.0
    %1219 = vmatpush1.msra.mxu0 0.0
    %1220 = vmatprep.subr.mxu0 0.0
    %1221 = vmatpush1.msra.mxu0 0.0
    %1222 = vmatprep.subr.mxu0 0.0
    %1223 = vmatpush1.msra.mxu0 0.0
    %1224 = vmatprep.subr.mxu0 0.0
    %1225 = vmatpush1.msra.mxu0 0.0
    %1226 = vmatprep.subr.mxu0 0.0
    %1227 = vmatpush1.msra.mxu0 0.0
    %1228 = vmatprep.subr.mxu0 0.0
    %1229 = vmatpush1.msra.mxu0 0.0
    %1230 = vmatprep.subr.mxu0 0.0
    %1231 = vmatpush1.msra.mxu0 0.0
    %1232 = vmatprep.mubr.f32.mxu0 0.0
    %v1233 = vand.u32 %v654, 4294901760
    %1234 = vmatmul.mubr.f32.gmra.mrb[0].mxu0 %v1233
    %v1235 = vpop.f32.mrb[0].mxu0
    %v1236 = vadd.f32 %v1145, %v1235
    %v1237 = vpop.f32.mrb[0].mxu0
    %1238 = vmatprep.mubr.f32.mxu0 0.0
    %v1239 = vand.u32 %v657, 4294901760
    %1240 = vmatmul.mubr.f32.gmra.mrb[0].mxu0 %v1239
    %v1241 = vpop.f32.mrb[0].mxu0
    %v1242 = vadd.f32 %v1151, %v1241
    %v1243 = vpop.f32.mrb[0].mxu0
    %1244 = vmatprep.mubr.f32.mxu0 0.0
    %v1245 = vand.u32 %v660, 4294901760
    %1246 = vmatmul.mubr.f32.gmra.mrb[0].mxu0 %v1245
    %v1247 = vpop.f32.mrb[0].mxu0
    %v1248 = vadd.f32 %v1157, %v1247
    %v1249 = vpop.f32.mrb[0].mxu0
    %1250 = vmatprep.mubr.f32.mxu0 0.0
    %v1251 = vand.u32 %v663, 4294901760
    %1252 = vmatmul.mubr.f32.gmra.mrb[0].mxu0 %v1251
    %v1253 = vpop.f32.mrb[0].mxu0
    %v1254 = vadd.f32 %v1163, %v1253
    %v1255 = vpop.f32.mrb[0].mxu0
    %1256 = vdwg.mxu0
    %v1257 = vmul.f32 %v627, %v1236
    %v1258 = vmul.f32 %v633, %v1242
    %v1259 = vmul.f32 %v639, %v1248
    %v1260 = vmul.f32 %v645, %v1254
    %v1261 = vadd.f32 %v1257, %v1258
    %v1262 = vadd.f32 %v1261, %v1259
    %v1263 = vadd.f32 %v1262, %v1260
    %v1264 = vrot.slane %v1263, 4
    %v1265 = vadd.f32 %v1263, %v1264
    %v1266 = vrot.slane %v1265, 2
    %v1267 = vadd.f32 %v1265, %v1266
    %v1268 = vrot.slane %v1267, 1
    %v1269 = vadd.f32 %v1267, %v1268
    %v1270 = vxor.u32 %v1269, 2147483648
    %v1271 = vmul.f32 %v1270, 1.442695
    %v1272 = vpow.pop %v1271
    %v1273 = vadd.f32 %v1272, 1.0
    %v1274 = vrcp.pop %v1273
    %v1275 = vmul.f32 1.0, %v1274
    %1276 = vst [vmem:[#allocation2] sm:$0x1] %v1275
    // Predicated region
    $region18: #{tpu_custom_call.1} parent=1 // pred_check
      _
    $region19: #{tpu_custom_call.1} parent=1 // pred_check_branch
      %1278 = sbr.rel (0) target = $region21
    $region20: #{tpu_custom_call.1} parent=1 // pred_region
      %s1280 = ssub.s32 16, 16
      %1281 = vsyncadd [#allocation3], %s1280
      %s1283 = sshll.u32 [#allocation2], 4
      %s1284 = int_to_ptr.vmem [resolvable:$true] %s1283
      %1286 = dma.vmem_to_hbm [thread:$0]  %s1284, 16, %s4, [#allocation3]
    $region21: #{tpu_custom_call.1} parent=1 // pred_fallthru
      _
    // Predicated region
    $region22: #{tpu_custom_call.1} parent=1 // pred_check
      _
    $region23: #{tpu_custom_call.1} parent=1 // pred_check_branch
      %1288 = sbr.rel (0) target = $region25
    $region24: #{tpu_custom_call.1} parent=1 // pred_region
      %1289 = dma.done [#allocation3], 16
    $region25: #{tpu_custom_call.1} parent=1 // pred_fallthru
      _
    %1290 = vsyncpa [#allocation3], 1

</llo_original>
